<compile_context>
chip_gen: v5e
topology: v5e:2x2
jax: 0.10.0
libtpu: 0.0.40
codegen_flags: <defaults>
</compile_context>

<pallas_src>
import functools

import jax
import jax.numpy as jnp
from jax.experimental import pallas as pl
from jax.experimental.pallas import tpu as pltpu
import numpy as np

_MIB = 1024 * 1024


# --------------------------------------------------------------------------- #
# Hardware queries (best-effort; safe fallbacks if they are unavailable).
# --------------------------------------------------------------------------- #
def _device_kind() -> str:
    try:
        return jax.devices()[0].device_kind.lower()
    except Exception:
        return ""


def _has_bf16_vector_units() -> bool:
    # v5 and older have no bf16 VPU/EUP -> keep f32 compute there.
    kind = _device_kind()
    return not any(old in kind for old in ("v2", "v3", "v4", "v5"))


def _vmem_capacity_bytes() -> int:
    try:
        return int(pltpu.get_tpu_info().vmem_capacity_bytes)
    except Exception:
        return 64 * _MIB  # conservative: v7x per-TensorCore VMEM


# --------------------------------------------------------------------------- #
# Tiling helpers.
# --------------------------------------------------------------------------- #
def _round_up(x: int, m: int) -> int:
    return ((x + m - 1) // m) * m


def _sublane_pack(itemsize: int) -> int:
    # Sub-32-bit dtypes pack along sublanes: f32 -> 8, bf16 -> 16, int8/fp8 -> 32.
    return 8 * max(1, 4 // max(itemsize, 1))


def _choose_token_block(num_tokens: int, d: int, itemsize: int,
                        vmem_budget_bytes: int) -> int:
    """Token tile from a VMEM budget, with >=~4 grid steps for megacore sharding."""
    pack = _sublane_pack(itemsize)
    # Per-step VMEM ~= double-buffer(2) * (2 input streams + 1 output) * t_blk*d*itemsize.
    per_token = 2 * 3 * d * max(itemsize, 1)
    t_blk = vmem_budget_bytes // max(per_token, 1)
    t_blk = min(t_blk, 8192)
    # Never a single giant block: aim for >= 4 grid steps so ("parallel",) can
    # split the token grid across both TensorCores on v7x.
    target = max(pack, _round_up(pl.cdiv(num_tokens, 4), pack))
    t_blk = min(t_blk, target)
    t_blk = max(pack, (t_blk // pack) * pack)  # sublane-pack aligned
    if t_blk >= num_tokens:
        return num_tokens  # single full-extent block (any size allowed)
    return t_blk


# --------------------------------------------------------------------------- #
# Kernel bodies.
# --------------------------------------------------------------------------- #
def _silu(x, approx_recip: bool):
    if approx_recip:
        # f32 path: keep the divide on the cheap EUP reciprocal slot.
        one = jnp.asarray(1.0, x.dtype)
        return x * pl.reciprocal(one + jnp.exp(-x), approx=True)
    # bf16 path (v6e/v7x): native bf16 sigmoid (EUP exp).
    return x * jax.nn.sigmoid(x)


def _silu_mul_split_kernel(gate_ref, up_ref, out_ref, *, compute_dtype, approx_recip):
    gate = gate_ref[...].astype(compute_dtype)
    up = up_ref[...].astype(compute_dtype)
    out_ref[...] = (_silu(gate, approx_recip) * up).astype(out_ref.dtype)


def _silu_mul_fused_kernel(x_ref, out_ref, *, d, compute_dtype, approx_recip):
    # Non-128-aligned halves: slice inside the kernel (static slices).
    x = x_ref[...]
    gate = x[:, :d].astype(compute_dtype)
    up = x[:, d:].astype(compute_dtype)
    out_ref[...] = (_silu(gate, approx_recip) * up).astype(out_ref.dtype)


# --------------------------------------------------------------------------- #
# Module.
# --------------------------------------------------------------------------- #
class SiluAndMul:
    """JAX/Pallas port of the PyTorch SiluAndMul module.

    forward(x): x1 = x[..., :d], x2 = x[..., d:] with d = x.shape[-1] // 2,
    returns silu(x1) * x2 with the same dtype as x.
    """

    def __call__(self, x, block_tokens: int | None = None,
                 input_buffering: int | None = None):
        orig_shape = x.shape
        two_d = orig_shape[-1]
        assert two_d % 2 == 0, "last dim must be even for SiluAndMul"
        d = two_d // 2

        x2d = x.reshape(-1, two_d)
        num_tokens = x2d.shape[0]
        itemsize = jnp.dtype(x.dtype).itemsize
        pack = _sublane_pack(itemsize)

        # Generation-aware VMEM sizing: 64 MiB limit on 128 MiB parts (v5e/v6e),
        # 32 MiB on v7x (64 MiB/TC); budget the double-buffered working set to
        # ~3/4 of the limit to leave room for internal scratch.
        vmem_cap = _vmem_capacity_bytes()
        vmem_limit = min(vmem_cap // 2, 64 * _MIB)
        vmem_budget = (vmem_limit * 3) // 4

        if block_tokens is not None:
            t_blk = int(block_tokens)
            if t_blk < num_tokens:
                t_blk = max(pack, (t_blk // pack) * pack)  # keep BlockSpec rule
            else:
                t_blk = num_tokens
        else:
            t_blk = _choose_token_block(num_tokens, d, itemsize, vmem_budget)
        t_blk = min(t_blk, num_tokens)
        grid = (pl.cdiv(num_tokens, t_blk),)

        # bf16 compute on chips with bf16 vector units; f32 otherwise (incl. v5e).
        use_bf16 = x.dtype == jnp.bfloat16 and _has_bf16_vector_units()
        compute_dtype = jnp.bfloat16 if use_bf16 else jnp.float32
        approx_recip = compute_dtype == jnp.float32

        spec_kwargs = {}
        if input_buffering is not None and input_buffering > 2:
            spec_kwargs = dict(pipeline_mode=pl.Buffered(int(input_buffering)))

        cost = pl.CostEstimate(
            flops=4 * num_tokens * d,
            transcendentals=num_tokens * d,
            bytes_accessed=3 * num_tokens * d * itemsize,
        )

        if d % 128 == 0:
            # Lane-aligned halves: read gate/up straight out of the same HBM buffer
            # via two BlockSpecs (block-column 0 = gate, 1 = up). Zero-copy split.
            kernel = functools.partial(_silu_mul_split_kernel,
                                       compute_dtype=compute_dtype,
                                       approx_recip=approx_recip)
            in_specs = [
                pl.BlockSpec((t_blk, d), lambda i: (i, 0), **spec_kwargs),
                pl.BlockSpec((t_blk, d), lambda i: (i, 1), **spec_kwargs),
            ]
            operands = (x2d, x2d)
        else:
            # Non-128-aligned halves: pass x once at full width, slice in-kernel.
            kernel = functools.partial(_silu_mul_fused_kernel, d=d,
                                       compute_dtype=compute_dtype,
                                       approx_recip=approx_recip)
            in_specs = [pl.BlockSpec((t_blk, two_d), lambda i: (i, 0), **spec_kwargs)]
            operands = (x2d,)

        out2d = pl.pallas_call(
            kernel,
            out_shape=jax.ShapeDtypeStruct((num_tokens, d), x.dtype),
            grid_spec=pltpu.PrefetchScalarGridSpec(
                num_scalar_prefetch=0,
                grid=grid,
                in_specs=in_specs,
                out_specs=pl.BlockSpec((t_blk, d), lambda i: (i, 0)),
            ),
            compiler_params=pltpu.CompilerParams(
                dimension_semantics=("parallel",),
                vmem_limit_bytes=vmem_limit,
            ),
            cost_estimate=cost,
        )(*operands)

        return out2d.reshape(orig_shape[:-1] + (d,))


# --------------------------------------------------------------------------- #
# Reference + tests.
# --------------------------------------------------------------------------- #
def _reference_silu_and_mul(x):
    d = x.shape[-1] // 2
    a = x[..., :d].astype(jnp.float32)
    b = x[..., d:].astype(jnp.float32)
    return (a * jax.nn.sigmoid(a) * b).astype(x.dtype)


def _check(got, want, rtol=2e-2, atol=2e-2):
    # Tolerance intentionally loose: bf16 compute on v6e/v7x and the approximate
    # EUP reciprocal on the f32 path both deviate slightly from the f32 reference.
    np.testing.assert_allclose(np.asarray(got, dtype=np.float32),
                               np.asarray(want, dtype=np.float32),
                               rtol=rtol, atol=atol)


if __name__ == "__main__":
    key = jax.random.PRNGKey(0)
    k1, k2, k3 = jax.random.split(key, 3)
    mod = SiluAndMul()

    # Case 1: lane-aligned half (hidden=512 -> d=256), bf16, (batch, seq, hidden).
    x1 = jax.random.normal(k1, (2, 8, 512), dtype=jnp.float32).astype(jnp.bfloat16)
    y1 = mod(x1)
    jax.block_until_ready(y1)
    _check(y1, _reference_silu_and_mul(x1))

    # Case 2: ragged token count with a forced small tile (multi-step grid + edge block), f32.
    x2 = jax.random.normal(k2, (20, 256), dtype=jnp.float32)
    y2 = mod(x2, block_tokens=8)
    jax.block_until_ready(y2)
    _check(y2, _reference_silu_and_mul(x2))

    # Case 3: non-128-aligned half (hidden=32 -> d=16): single-input in-kernel-slice path, bf16.
    x3 = jax.random.normal(k3, (2, 8, 32), dtype=jnp.float32).astype(jnp.bfloat16)
    y3 = mod(x3)
    jax.block_until_ready(y3)
    _check(y3, _reference_silu_and_mul(x3))

    print("KERNEL_OK")
</pallas_src>

<mosaic_0001>
module attributes {stable_mosaic.version = 11 : i64} {
  func.func @_silu_mul_split_kernel(%arg0: i32, %arg1: memref<16x256xbf16, #tpu.memory_space<vmem>>, %arg2: memref<16x256xbf16, #tpu.memory_space<vmem>>, %arg3: memref<16x256xbf16, #tpu.memory_space<vmem>>) attributes {dimension_semantics = [#tpu.dimension_semantics<parallel>], iteration_bounds = array<i64: 1>, scalar_prefetch = 0 : i64, scratch_operands = 0 : i64, tpu.core_type = #tpu.core_type<tc>, window_params = [{transform_indices = @transform_0, window_bounds = array<i64: 16, 256>}, {transform_indices = @transform_1, window_bounds = array<i64: 16, 256>}, {transform_indices = @transform_2, window_bounds = array<i64: 16, 256>}]} {
    %c0 = arith.constant 0 : index
    %c0_0 = arith.constant 0 : index
    %0 = vector.load %arg1[%c0, %c0_0] : memref<16x256xbf16, #tpu.memory_space<vmem>>, vector<16x256xbf16>
    %c0_1 = arith.constant 0 : index
    %c0_2 = arith.constant 0 : index
    %1 = vector.load %arg2[%c0_1, %c0_2] : memref<16x256xbf16, #tpu.memory_space<vmem>>, vector<16x256xbf16>
    %2 = arith.negf %0 : vector<16x256xbf16>
    %3 = math.exp %2 : vector<16x256xbf16>
    %cst = arith.constant 1.000000e+00 : bf16
    %4 = vector.broadcast %cst : bf16 to vector<16x256xbf16>
    %5 = arith.addf %4, %3 : vector<16x256xbf16>
    %6 = arith.divf %4, %5 : vector<16x256xbf16>
    %7 = arith.mulf %0, %6 : vector<16x256xbf16>
    %8 = arith.mulf %7, %1 : vector<16x256xbf16>
    %c0_3 = arith.constant 0 : index
    %c0_4 = arith.constant 0 : index
    %9 = vector.load %arg3[%c0_3, %c0_4] : memref<16x256xbf16, #tpu.memory_space<vmem>>, vector<16x256xbf16>
    tpu.vector_store %arg3[%c0_3, %c0_4], %8 {strides = array<i32>} : memref<16x256xbf16, #tpu.memory_space<vmem>>, vector<16x256xbf16>,
    return
  }
  func.func @transform_0(%arg0: i32) -> (i32, i32) {
    %c0_i32 = arith.constant 0 : i32
    %c0_i32_0 = arith.constant 0 : i32
    return %arg0, %c0_i32 : i32, i32
  }
  func.func @transform_1(%arg0: i32) -> (i32, i32) {
    %c1_i32 = arith.constant 1 : i32
    %c0_i32 = arith.constant 0 : i32
    return %arg0, %c1_i32 : i32, i32
  }
  func.func @transform_2(%arg0: i32) -> (i32, i32) {
    %c0_i32 = arith.constant 0 : i32
    %c0_i32_0 = arith.constant 0 : i32
    return %arg0, %c0_i32 : i32, i32
  }
}

</mosaic_0001>

<llo_original>
// kernel: tpu_custom_call.1
$region0: #{tpu_custom_call.1}
  #allocation0 [shape = 'u32[]', space=smem, size = 0x4, offset = 0x4, fixed_abs, tag = 'smem constant byte address 0x4 - core index']
  #allocation1 [shape = 'u32[72,128]{1,0:T(1,128)}', space=vmem, size = 0x9000, scoped, tag = 'internal scratch']
  %s0 = inlined_call_operand.hbm [shape: bf16[16,512], index: 0, kind: input, shape index: {}]
  %s1 = inlined_call_operand.hbm [shape: bf16[16,512], index: 1, kind: input, shape index: {}]
  %s2 = inlined_call_operand.hbm [shape: bf16[16,256], index: 2, kind: output, shape index: {}]
  %s3 = sld [smem:[#allocation0]]
  $region26: #{tpu_custom_call.1} parent=0
    _
  %s5 = ssub.s32 1, %s3
  %s6 = scalar_select 0, %s5, %s3
  $region1: #{tpu_custom_call.1} parent=0
    #allocation2 [shape = 'u8[8192]{0}', space=vmem, size = 0x2000, scoped, tag = 'input window, operand 0, single buffered']
    #allocation3 [shape = 's32[1]{0}', space=sflag, size = 0x4, scoped, tag = 'scoped memory for tpu_custom_call.1']
    #allocation4 [shape = 's32[1]{0}', space=sflag, size = 0x4, scoped, tag = 'scoped memory for tpu_custom_call.1']
    #allocation5 [shape = 'u8[8192]{0}', space=vmem, size = 0x2000, scoped, tag = 'input window, operand 1, single buffered']
    #allocation6 [shape = 's32[1]{0}', space=sflag, size = 0x4, scoped, tag = 'scoped memory for tpu_custom_call.1']
    #allocation7 [shape = 'u8[8192]{0}', space=vmem, size = 0x2000, scoped, tag = 'output window, operand 0, single buffered']
    %7 = vsyncpa [#allocation3], 0
    %8 = vsyncpa [#allocation6], 0
    %9 = vsyncpa [#allocation4], 0
    // Predicated region
    $region2: #{tpu_custom_call.1} parent=1 // pred_check
      _
    $region3: #{tpu_custom_call.1} parent=1 // pred_check_branch
      %11 = sbr.rel (0) target = $region5
    $region4: #{tpu_custom_call.1} parent=1 // pred_region
      %13 = vsyncadd [#allocation3], 0
      %s14 = sshll.u32 %s0, 4
      %s15 = int_to_ptr.hbm [resolvable:$true] %s14
      %s16 = sshll.u32 [#allocation2], 4
      %s17 = int_to_ptr.vmem [resolvable:$true] %s16
      %22 = dma.hbm_to_vmem [thread:$0]  %s15, 256, %s17, [#allocation3], 256, 128, 8
    $region5: #{tpu_custom_call.1} parent=1 // pred_fallthru
      _
    // Predicated region
    $region6: #{tpu_custom_call.1} parent=1 // pred_check
      _
    $region7: #{tpu_custom_call.1} parent=1 // pred_check_branch
      %24 = sbr.rel (0) target = $region9
    $region8: #{tpu_custom_call.1} parent=1 // pred_region
      %26 = vsyncadd [#allocation6], 0
      %s27 = scalar_lea.hbm %s1, 8
      %s28 = sshll.u32 %s27, 4
      %s29 = int_to_ptr.hbm [resolvable:$true] %s28
      %s30 = sshll.u32 [#allocation5], 4
      %s31 = int_to_ptr.vmem [resolvable:$true] %s30
      %36 = dma.hbm_to_vmem [thread:$0]  %s29, 256, %s31, [#allocation6], 256, 128, 8
    $region9: #{tpu_custom_call.1} parent=1 // pred_fallthru
      _
    // Predicated region
    $region10: #{tpu_custom_call.1} parent=1 // pred_check
      _
    $region11: #{tpu_custom_call.1} parent=1 // pred_check_branch
      %38 = sbr.rel (0) target = $region13
    $region12: #{tpu_custom_call.1} parent=1 // pred_region
      %40 = dma.done [#allocation3], 256
    $region13: #{tpu_custom_call.1} parent=1 // pred_fallthru
      _
    // Predicated region
    $region14: #{tpu_custom_call.1} parent=1 // pred_check
      _
    $region15: #{tpu_custom_call.1} parent=1 // pred_check_branch
      %42 = sbr.rel (0) target = $region17
    $region16: #{tpu_custom_call.1} parent=1 // pred_region
      %44 = dma.done [#allocation6], 256
    $region17: #{tpu_custom_call.1} parent=1 // pred_fallthru
      _
    %v46 = vld [vmem:[#allocation2] sm:$0xff]
    %v47 = vld [vmem:[#allocation2 + $0x8] sm:$0xff]
    %v48 = vld [vmem:[#allocation5] sm:$0xff]
    %v49 = vld [vmem:[#allocation5 + $0x8] sm:$0xff]
    %v50 = vxor.u32 %v46, 2147516416
    %v51 = vxor.u32 %v47, 2147516416
    %v52 = vunpack.c.l.bf16 %v50
    %v53 = vunpack.c.h.bf16 %v50
    %v54 = vunpack.c.l.bf16 %v51
    %v55 = vunpack.c.h.bf16 %v51
    %v56 = vmul.f32 %v52, 1.442695
    %v57 = vpow.pop %v56
    %v58 = vmul.f32 %v53, 1.442695
    %v59 = vpow.pop %v58
    %v60 = vmul.f32 %v54, 1.442695
    %v61 = vpow.pop %v60
    %v62 = vmul.f32 %v55, 1.442695
    %v63 = vpow.pop %v62
    %v64 = vpack.c.bf16 %v59, %v57
    %v65 = vpack.c.bf16 %v63, %v61
    %v66 = vunpack.c.l.bf16 %v64
    %v67 = vunpack.c.h.bf16 %v64
    %v68 = vunpack.c.l.bf16 %v65
    %v69 = vunpack.c.h.bf16 %v65
    %v70 = vadd.f32 %v66, 1.0
    %v71 = vadd.f32 %v67, 1.0
    %v72 = vadd.f32 %v68, 1.0
    %v73 = vadd.f32 %v69, 1.0
    %v74 = vpack.c.bf16 %v71, %v70
    %v75 = vpack.c.bf16 %v73, %v72
    %v76 = vunpack.c.h.bf16 1065369472
    %v77 = vunpack.c.l.bf16 1065369472
    %v78 = vunpack.c.h.bf16 %v74
    %v79 = vunpack.c.l.bf16 %v74
    %v80 = vrcp.pop %v78
    %v81 = vmul.f32 %v76, %v80
    %v82 = vrcp.pop %v79
    %v83 = vmul.f32 %v77, %v82
    %v84 = vpack.c.bf16 %v81, %v83
    %v85 = vunpack.c.h.bf16 %v75
    %v86 = vunpack.c.l.bf16 %v75
    %v87 = vrcp.pop %v85
    %v88 = vmul.f32 %v76, %v87
    %v89 = vrcp.pop %v86
    %v90 = vmul.f32 %v77, %v89
    %v91 = vpack.c.bf16 %v88, %v90
    %v92 = vunpack.c.l.bf16 %v46
    %v93 = vunpack.c.h.bf16 %v46
    %v94 = vunpack.c.l.bf16 %v47
    %v95 = vunpack.c.h.bf16 %v47
    %v96 = vunpack.c.l.bf16 %v84
    %v97 = vunpack.c.h.bf16 %v84
    %v98 = vunpack.c.l.bf16 %v91
    %v99 = vunpack.c.h.bf16 %v91
    %v100 = vmul.f32 %v92, %v96
    %v101 = vmul.f32 %v93, %v97
    %v102 = vmul.f32 %v94, %v98
    %v103 = vmul.f32 %v95, %v99
    %v104 = vpack.c.bf16 %v101, %v100
    %v105 = vpack.c.bf16 %v103, %v102
    %v106 = vunpack.c.l.bf16 %v104
    %v107 = vunpack.c.h.bf16 %v104
    %v108 = vunpack.c.l.bf16 %v105
    %v109 = vunpack.c.h.bf16 %v105
    %v110 = vunpack.c.l.bf16 %v48
    %v111 = vunpack.c.h.bf16 %v48
    %v112 = vunpack.c.l.bf16 %v49
    %v113 = vunpack.c.h.bf16 %v49
    %v114 = vmul.f32 %v106, %v110
    %v115 = vmul.f32 %v107, %v111
    %v116 = vmul.f32 %v108, %v112
    %v117 = vmul.f32 %v109, %v113
    %v118 = vpack.c.bf16 %v115, %v114
    %v119 = vpack.c.bf16 %v117, %v116
    %120 = vst [vmem:[#allocation7] sm:$0xff] %v118
    %121 = vst [vmem:[#allocation7 + $0x8] sm:$0xff] %v119
    // Predicated region
    $region18: #{tpu_custom_call.1} parent=1 // pred_check
      _
    $region19: #{tpu_custom_call.1} parent=1 // pred_check_branch
      %123 = sbr.rel (0) target = $region21
    $region20: #{tpu_custom_call.1} parent=1 // pred_region
      %125 = vsyncadd [#allocation4], 0
      %s126 = sshll.u32 [#allocation7], 4
      %s127 = int_to_ptr.vmem [resolvable:$true] %s126
      %s128 = sshll.u32 %s2, 4
      %s129 = int_to_ptr.hbm [resolvable:$true] %s128
      %134 = dma.vmem_to_hbm [thread:$0]  %s127, 256, %s129, [#allocation4], 128, 128, 8
    $region21: #{tpu_custom_call.1} parent=1 // pred_fallthru
      _
    // Predicated region
    $region22: #{tpu_custom_call.1} parent=1 // pred_check
      _
    $region23: #{tpu_custom_call.1} parent=1 // pred_check_branch
      %136 = sbr.rel (0) target = $region25
    $region24: #{tpu_custom_call.1} parent=1 // pred_region
      %138 = dma.done [#allocation4], 256
    $region25: #{tpu_custom_call.1} parent=1 // pred_fallthru
      _
    %139 = vsyncpa [#allocation3], 1
    %140 = vsyncpa [#allocation6], 1
    %141 = vsyncpa [#allocation4], 1

</llo_original>
